<compile_context>
chip_gen: v5e
topology: v5e:2x2
jax: 0.10.0
libtpu: 0.0.40
codegen_flags: <defaults>
</compile_context>

<pallas_src>
import jax
import jax.numpy as jnp
from jax.experimental import pallas as pl
from jax.experimental.pallas import tpu as pltpu


def _make_mlp_kernel(num_layers: int):
    """Kernel body: x_ref, (w0, b0, w1, b1, ..., w_{L-1}, b_{L-1}), out_ref."""

    def kernel(x_ref, *refs):
        o_ref = refs[-1]
        param_refs = refs[:-1]
        # x_ref block: (C_in, tile_n) -- batch dim squeezed out by the BlockSpec.
        h = x_ref[...].astype(jnp.float32)
        for l in range(num_layers):
            w = param_refs[2 * l][...]                           # (Cout_l, Cin_l), bf16
            b = param_refs[2 * l + 1][...].astype(jnp.float32)   # (Cout_l, 1), f32
            # bf16 x bf16 -> f32 on the MXU; point dim stays on lanes.
            h = jnp.dot(w, h.astype(w.dtype),
                        preferred_element_type=jnp.float32) + b
            if l < num_layers - 1:       # ReLU between layers, none after the last
                h = jnp.maximum(h, 0.0)
        o_ref[...] = h.astype(o_ref.dtype)

    return kernel


def _pick_tile_n(N: int, cap: int = 2048) -> int:
    """Lane-dense (multiple of 128) tile that minimizes padding under `cap`."""
    n128 = int(pl.cdiv(N, 128))              # N rounded up, in units of 128 lanes
    cap128 = max(1, cap // 128)
    n_tiles = int(pl.cdiv(n128, cap128))     # fewest tiles under the cap
    tile128 = int(pl.cdiv(n128, n_tiles))    # spread columns evenly over tiles
    return tile128 * 128


def mlp_conv_pallas(x_bcn, weights, biases, *, tile_n=None,
                    param_dtype=jnp.bfloat16):
    """Apply MLP_CONV to x_bcn of shape (B, C_in, N) -> (B, C_out, N).

    weights[l]: (C_l_out, C_l_in)  (PyTorch Conv1d weight with the size-1
                                    kernel dim squeezed)
    biases[l]:  (C_l_out,)
    """
    B, C_in, N = x_bcn.shape
    num_layers = len(weights)
    assert num_layers == len(biases) and num_layers >= 1
    assert weights[0].shape[1] == C_in, "first layer in_channels mismatch"
    C_out = weights[-1].shape[0]

    if tile_n is None:
        tile_n = _pick_tile_n(N)
    tile_n = int(max(128, (tile_n // 128) * 128))

    n_tiles = int(pl.cdiv(N, tile_n))
    n_pad = n_tiles * tile_n
    x_p = x_bcn if n_pad == N else jnp.pad(
        x_bcn, ((0, 0), (0, 0), (0, n_pad - N)))

    grid = (B, n_tiles)

    in_specs = [pl.BlockSpec((None, C_in, tile_n), lambda b, j: (b, 0, j))]
    flat_params = []
    for w, bias in zip(weights, biases):
        c_out_l, c_in_l = w.shape
        # Constant index_map => grid-invariant, stays resident in VMEM.
        in_specs.append(pl.BlockSpec((c_out_l, c_in_l), lambda b, j: (0, 0)))
        in_specs.append(pl.BlockSpec((c_out_l, 1), lambda b, j: (0, 0)))
        flat_params.append(w.astype(param_dtype))
        flat_params.append(bias.reshape(c_out_l, 1).astype(jnp.float32))

    out_spec = pl.BlockSpec((None, C_out, tile_n), lambda b, j: (b, 0, j))

    # Rough per-call VMEM footprint: double-buffered x/out blocks + resident
    # params + a few live f32 intermediates at the widest layer. Keep the
    # scoped limit above it, capped so it is valid on every generation
    # (v7x physical VMEM = 64 MiB).
    itemsize = jnp.dtype(x_p.dtype).itemsize
    c_max = max([C_in, C_out] + [w.shape[0] for w in weights])
    param_bytes = sum(int(p.size) * jnp.dtype(p.dtype).itemsize
                      for p in flat_params)
    est = (2 * C_in * tile_n * itemsize
           + 2 * C_out * tile_n * itemsize
           + param_bytes
           + 4 * c_max * tile_n * 4)
    vmem_limit = int(min(max(2 * est, 16 * 1024 * 1024), 48 * 1024 * 1024))

    # Advisory cost hint for XLA's scheduler.
    flops = 2 * B * n_pad * sum(int(w.shape[0]) * int(w.shape[1])
                                for w in weights)
    bytes_accessed = (int(x_p.size) * itemsize
                      + B * C_out * n_pad * itemsize
                      + param_bytes)
    cost = pl.CostEstimate(flops=flops, transcendentals=0,
                           bytes_accessed=bytes_accessed)

    kernel = _make_mlp_kernel(num_layers)

    out = pl.pallas_call(
        kernel,
        out_shape=jax.ShapeDtypeStruct((B, C_out, n_pad), x_p.dtype),
        grid_spec=pltpu.PrefetchScalarGridSpec(
            num_scalar_prefetch=0,
            grid=grid,
            in_specs=in_specs,
            out_specs=out_spec,
        ),
        compiler_params=pltpu.CompilerParams(
            dimension_semantics=("parallel", "parallel"),
            vmem_limit_bytes=vmem_limit,
        ),
        cost_estimate=cost,
    )(x_p, *flat_params)

    return out if n_pad == N else out[:, :, :N]


def init_mlp_conv_params(key, in_channel, layer_dims):
    """PyTorch Conv1d default init (uniform +-1/sqrt(fan_in)); weight (out, in)."""
    weights, biases = [], []
    last = in_channel
    for out_ch in layer_dims:
        key, kw, kb = jax.random.split(key, 3)
        bound = 1.0 / (last ** 0.5)
        w = jax.random.uniform(kw, (out_ch, last), jnp.float32, -bound, bound)
        b = jax.random.uniform(kb, (out_ch,), jnp.float32, -bound, bound)
        weights.append(w)
        biases.append(b)
        last = out_ch
    return weights, biases


def mlp_conv_reference(x_bcn, weights, biases, param_dtype=jnp.float32):
    """Plain-JAX NCW reference of the PyTorch forward.

    param_dtype=jnp.bfloat16 reproduces the kernel's precision recipe
    (bf16 operands, f32 accumulation); jnp.float32 is the full-precision
    module semantics.
    """
    h = x_bcn.astype(jnp.float32)
    L = len(weights)
    for l in range(L):
        w = weights[l].astype(param_dtype)
        b = biases[l].astype(jnp.float32).reshape(1, -1, 1)
        h = jnp.einsum("oc,bcn->bon", w, h.astype(w.dtype),
                       preferred_element_type=jnp.float32) + b
        if l < L - 1:
            h = jnp.maximum(h, 0.0)
    return h


if __name__ == "__main__":
    # MLP_CONV(in_channel=4, layer_dims=[32, 64, 16], bn=None)
    in_channel = 4
    layer_dims = [32, 64, 16]
    B, N = 2, 16

    key = jax.random.PRNGKey(0)
    key, kx = jax.random.split(key)
    x = jax.random.normal(kx, (B, in_channel, N), jnp.float32)  # NCW like PyTorch
    weights, biases = init_mlp_conv_params(key, in_channel, layer_dims)

    out = jax.block_until_ready(mlp_conv_pallas(x, weights, biases))
    assert out.shape == (B, layer_dims[-1], N), out.shape

    # Matched-precision reference (bf16 params, f32 accumulation) -> tight check.
    ref_bf16 = mlp_conv_reference(x, weights, biases, param_dtype=jnp.bfloat16)
    assert jnp.allclose(out, ref_bf16, atol=2e-3, rtol=2e-3), "mismatch vs bf16 ref"

    # Full-f32 module semantics -> loose check (bf16 weight rounding only).
    ref_f32 = mlp_conv_reference(x, weights, biases, param_dtype=jnp.float32)
    assert jnp.allclose(out, ref_f32, atol=5e-2, rtol=5e-2), "mismatch vs f32 ref"

    print("KERNEL_OK")
</pallas_src>

<mosaic_0001>
module attributes {stable_mosaic.version = 11 : i64} {
  func.func @kernel(%arg0: i32, %arg1: i32, %arg2: memref<1x4x128xf32, #tpu.memory_space<vmem>>, %arg3: memref<32x4xbf16, #tpu.memory_space<vmem>>, %arg4: memref<32x1xf32, #tpu.memory_space<vmem>>, %arg5: memref<64x32xbf16, #tpu.memory_space<vmem>>, %arg6: memref<64x1xf32, #tpu.memory_space<vmem>>, %arg7: memref<16x64xbf16, #tpu.memory_space<vmem>>, %arg8: memref<16x1xf32, #tpu.memory_space<vmem>>, %arg9: memref<1x16x128xf32, #tpu.memory_space<vmem>>) attributes {dimension_semantics = [#tpu.dimension_semantics<parallel>, #tpu.dimension_semantics<parallel>], iteration_bounds = array<i64: 2, 1>, scalar_prefetch = 0 : i64, scratch_operands = 0 : i64, tpu.core_type = #tpu.core_type<tc>, window_params = [{transform_indices = @transform_0, window_bounds = array<i64: 1, 4, 128>}, {pipeline_mode = #tpu.pipeline_mode<synchronous>, transform_indices = @transform_1, window_bounds = array<i64: 32, 4>}, {pipeline_mode = #tpu.pipeline_mode<synchronous>, transform_indices = @transform_2, window_bounds = array<i64: 32, 1>}, {pipeline_mode = #tpu.pipeline_mode<synchronous>, transform_indices = @transform_3, window_bounds = array<i64: 64, 32>}, {pipeline_mode = #tpu.pipeline_mode<synchronous>, transform_indices = @transform_4, window_bounds = array<i64: 64, 1>}, {pipeline_mode = #tpu.pipeline_mode<synchronous>, transform_indices = @transform_5, window_bounds = array<i64: 16, 64>}, {pipeline_mode = #tpu.pipeline_mode<synchronous>, transform_indices = @transform_6, window_bounds = array<i64: 16, 1>}, {transform_indices = @transform_7, window_bounds = array<i64: 1, 16, 128>}]} {
    %c0 = arith.constant 0 : index
    %c0_0 = arith.constant 0 : index
    %c0_1 = arith.constant 0 : index
    %0 = vector.load %arg2[%c0, %c0_0, %c0_1] : memref<1x4x128xf32, #tpu.memory_space<vmem>>, vector<1x4x128xf32>
    %1 = vector.shape_cast %0 : vector<1x4x128xf32> to vector<4x128xf32>
    %c0_2 = arith.constant 0 : index
    %c0_3 = arith.constant 0 : index
    %2 = vector.load %arg3[%c0_2, %c0_3] : memref<32x4xbf16, #tpu.memory_space<vmem>>, vector<32x4xbf16>
    %c0_4 = arith.constant 0 : index
    %c0_5 = arith.constant 0 : index
    %3 = vector.load %arg4[%c0_4, %c0_5] : memref<32x1xf32, #tpu.memory_space<vmem>>, vector<32x1xf32>
    %4 = arith.truncf %1 : vector<4x128xf32> to vector<4x128xbf16>
    %cst = arith.constant dense<0.000000e+00> : vector<32x128xf32>
    %5 = tpu.matmul %2, %4, %cst {dimension_numbers = #tpu.dot_dimension_numbers<[1], [0], [0], [1], [0, 0, 1, 1], [], []>} : vector<32x4xbf16>, vector<4x128xbf16>, vector<32x128xf32> -> vector<32x128xf32>
    %6 = vector.broadcast %3 : vector<32x1xf32> to vector<32x128xf32>
    %7 = arith.addf %5, %6 : vector<32x128xf32>
    %cst_6 = arith.constant 0.000000e+00 : f32
    %8 = vector.broadcast %cst_6 : f32 to vector<32x128xf32>
    %9 = arith.maximumf %7, %8 : vector<32x128xf32>
    %c0_7 = arith.constant 0 : index
    %c0_8 = arith.constant 0 : index
    %10 = vector.load %arg5[%c0_7, %c0_8] : memref<64x32xbf16, #tpu.memory_space<vmem>>, vector<64x32xbf16>
    %c0_9 = arith.constant 0 : index
    %c0_10 = arith.constant 0 : index
    %11 = vector.load %arg6[%c0_9, %c0_10] : memref<64x1xf32, #tpu.memory_space<vmem>>, vector<64x1xf32>
    %12 = arith.truncf %9 : vector<32x128xf32> to vector<32x128xbf16>
    %cst_11 = arith.constant dense<0.000000e+00> : vector<64x128xf32>
    %13 = tpu.matmul %10, %12, %cst_11 {dimension_numbers = #tpu.dot_dimension_numbers<[1], [0], [0], [1], [0, 0, 1, 1], [], []>} : vector<64x32xbf16>, vector<32x128xbf16>, vector<64x128xf32> -> vector<64x128xf32>
    %14 = vector.broadcast %11 : vector<64x1xf32> to vector<64x128xf32>
    %15 = arith.addf %13, %14 : vector<64x128xf32>
    %cst_12 = arith.constant 0.000000e+00 : f32
    %16 = vector.broadcast %cst_12 : f32 to vector<64x128xf32>
    %17 = arith.maximumf %15, %16 : vector<64x128xf32>
    %c0_13 = arith.constant 0 : index
    %c0_14 = arith.constant 0 : index
    %18 = vector.load %arg7[%c0_13, %c0_14] : memref<16x64xbf16, #tpu.memory_space<vmem>>, vector<16x64xbf16>
    %c0_15 = arith.constant 0 : index
    %c0_16 = arith.constant 0 : index
    %19 = vector.load %arg8[%c0_15, %c0_16] : memref<16x1xf32, #tpu.memory_space<vmem>>, vector<16x1xf32>
    %20 = arith.truncf %17 : vector<64x128xf32> to vector<64x128xbf16>
    %cst_17 = arith.constant dense<0.000000e+00> : vector<16x128xf32>
    %21 = tpu.matmul %18, %20, %cst_17 {dimension_numbers = #tpu.dot_dimension_numbers<[1], [0], [0], [1], [0, 0, 1, 1], [], []>} : vector<16x64xbf16>, vector<64x128xbf16>, vector<16x128xf32> -> vector<16x128xf32>
    %22 = vector.broadcast %19 : vector<16x1xf32> to vector<16x128xf32>
    %23 = arith.addf %21, %22 : vector<16x128xf32>
    %c0_18 = arith.constant 0 : index
    %c0_19 = arith.constant 0 : index
    %c0_20 = arith.constant 0 : index
    %24 = vector.load %arg9[%c0_18, %c0_19, %c0_20] : memref<1x16x128xf32, #tpu.memory_space<vmem>>, vector<1x16x128xf32>
    %25 = vector.shape_cast %24 : vector<1x16x128xf32> to vector<16x128xf32>
    %26 = vector.shape_cast %23 : vector<16x128xf32> to vector<1x16x128xf32>
    tpu.vector_store %arg9[%c0_18, %c0_19, %c0_20], %26 {strides = array<i32>} : memref<1x16x128xf32, #tpu.memory_space<vmem>>, vector<1x16x128xf32>,
    return
  }
  func.func @transform_0(%arg0: i32, %arg1: i32) -> (i32, i32, i32) {
    %c0_i32 = arith.constant 0 : i32
    %c0_i32_0 = arith.constant 0 : i32
    return %arg0, %c0_i32, %arg1 : i32, i32, i32
  }
  func.func @transform_1(%arg0: i32, %arg1: i32) -> (i32, i32) {
    %c0_i32 = arith.constant 0 : i32
    %c0_i32_0 = arith.constant 0 : i32
    %c0_i32_1 = arith.constant 0 : i32
    return %c0_i32, %c0_i32_0 : i32, i32
  }
  func.func @transform_2(%arg0: i32, %arg1: i32) -> (i32, i32) {
    %c0_i32 = arith.constant 0 : i32
    %c0_i32_0 = arith.constant 0 : i32
    %c0_i32_1 = arith.constant 0 : i32
    return %c0_i32, %c0_i32_0 : i32, i32
  }
  func.func @transform_3(%arg0: i32, %arg1: i32) -> (i32, i32) {
    %c0_i32 = arith.constant 0 : i32
    %c0_i32_0 = arith.constant 0 : i32
    %c0_i32_1 = arith.constant 0 : i32
    return %c0_i32, %c0_i32_0 : i32, i32
  }
  func.func @transform_4(%arg0: i32, %arg1: i32) -> (i32, i32) {
    %c0_i32 = arith.constant 0 : i32
    %c0_i32_0 = arith.constant 0 : i32
    %c0_i32_1 = arith.constant 0 : i32
    return %c0_i32, %c0_i32_0 : i32, i32
  }
  func.func @transform_5(%arg0: i32, %arg1: i32) -> (i32, i32) {
    %c0_i32 = arith.constant 0 : i32
    %c0_i32_0 = arith.constant 0 : i32
    %c0_i32_1 = arith.constant 0 : i32
    return %c0_i32, %c0_i32_0 : i32, i32
  }
  func.func @transform_6(%arg0: i32, %arg1: i32) -> (i32, i32) {
    %c0_i32 = arith.constant 0 : i32
    %c0_i32_0 = arith.constant 0 : i32
    %c0_i32_1 = arith.constant 0 : i32
    return %c0_i32, %c0_i32_0 : i32, i32
  }
  func.func @transform_7(%arg0: i32, %arg1: i32) -> (i32, i32, i32) {
    %c0_i32 = arith.constant 0 : i32
    %c0_i32_0 = arith.constant 0 : i32
    return %arg0, %c0_i32, %arg1 : i32, i32, i32
  }
}

</mosaic_0001>

<llo_original>
// kernel: tpu_custom_call.1
$region0: #{tpu_custom_call.1}
  #allocation0 [shape = 'u32[]', space=smem, size = 0x4, offset = 0x4, fixed_abs, tag = 'smem constant byte address 0x4 - core index']
  #allocation1 [shape = 'u32[72,128]{1,0:T(1,128)}', space=vmem, size = 0x9000, scoped, tag = 'internal scratch']
  %s0 = inlined_call_operand.vmem [shape: f32[2,4,128], index: 0, kind: input, shape index: {}]
  %s1 = inlined_call_operand.vmem [shape: bf16[32,4], index: 1, kind: input, shape index: {}]
  %s2 = inlined_call_operand.vmem [shape: f32[32,1], index: 2, kind: input, shape index: {}]
  %s3 = inlined_call_operand.vmem [shape: bf16[64,32], index: 3, kind: input, shape index: {}]
  %s4 = inlined_call_operand.vmem [shape: f32[64,1], index: 4, kind: input, shape index: {}]
  %s5 = inlined_call_operand.vmem [shape: bf16[16,64], index: 5, kind: input, shape index: {}]
  %s6 = inlined_call_operand.vmem [shape: f32[16,1], index: 6, kind: input, shape index: {}]
  %s7 = inlined_call_operand.hbm [shape: f32[2,16,128], index: 7, kind: output, shape index: {}]
  %s8 = sld [smem:[#allocation0]]
  $region61: #{tpu_custom_call.1} parent=0
    _
  %s10 = ssub.s32 1, %s8
  %s11 = scalar_select 0, %s10, %s8
  $region1: #{tpu_custom_call.1} parent=0
    #allocation2 [shape = 'u8[16384]{0}', space=vmem, size = 0x4000, scoped, tag = 'output window, operand 0']
    #allocation3 [shape = 's32[2]{0}', space=sflag, size = 0x8, scoped, tag = 'scoped memory for tpu_custom_call.1']
    %12 = vsyncpa [#allocation3], 0
    %s13 = scalar_lea.sflag [#allocation3], 1
    %14 = vsyncpa %s13, 0
    loop: start=0, step=1, limit=4
    $region2: #{tpu_custom_call.1} parent=1 // loop_pre_header
      _
    $region3: #{tpu_custom_call.1} parent=1 // loop_header
      %s16 = sphi 0, %s20
      %p17 = scmp.ge.s32.totalorder %s16, 4
      %s23 = sphi 0, %s35
      %s24 = sphi 0, %s31
      %s25 = sphi 0, %s23
      %s26 = sphi 0, %s24
      %s27 = sphi 0, %s25
      %s28 = sphi 0, %s26
      %s40 = sphi 0, %s42
      %s43 = sphi 0, %s40
      %s44 = sphi 0, %s43
      %s60 = sphi 0, %s44
      %s64 = sphi 0, %s64
      %s66 = sphi 0, %s64
      %s67 = sphi 0, %s66
      %s81 = sphi 0, %s67
      %s85 = sphi 0, %s85
      %s87 = sphi 0, %s85
      %s88 = sphi 0, %s87
      %s102 = sphi 0, %s88
      %s106 = sphi 0, %s106
      %s108 = sphi 0, %s106
      %s109 = sphi 0, %s108
      %s123 = sphi 0, %s109
      %s127 = sphi 0, %s127
      %s129 = sphi 0, %s127
      %s130 = sphi 0, %s129
      %s144 = sphi 0, %s130
      %s148 = sphi 0, %s148
      %s150 = sphi 0, %s148
      %s151 = sphi 0, %s150
      %s165 = sphi 0, %s151
      %s169 = sphi 0, %s169
      %s171 = sphi 0, %s169
      %s172 = sphi 0, %s171
      %s186 = sphi 0, %s172
      %s194 = sphi 0, %s196
      %s197 = sphi 0, %s194
      %s198 = sphi 0, %s197
      %s214 = sphi 0, %s198
    $region4: #{tpu_custom_call.1} parent=1 // loop_header_branch
      %19 = sbr.rel (%p17) target = $region8
    $region5: #{tpu_custom_call.1} parent=1 // loop_body
      %s21 = ssub.s32 %s16, 1
      %s22 = ssub.s32 %s16, 2
      %s29 = sadd.s32 1, %s24
      %p30 = scmp.ge.s32.totalorder %s29, 1
      %s31 = scalar_select %p30, 0, %s29
      %s32 = sadd.s32 1, %s23
      %s33 = scalar_select %p30, %s32, %s23
      %p34 = scmp.ge.s32.totalorder %s33, 2
      %s35 = scalar_select %p34, 0, %s33
      %s36 = ssub.s32 %s23, %s35
      %s37 = ssub.s32 %s24, %s31
      %s38 = sor.u32 %s36, %s37
      %p39 = scmp.eq.s32.totalorder %s38, 0
      %s41 = sadd.s32 %s40, 1
      %s42 = scalar_select %p39, %s40, %s41
      %p45 = pneg %p39
      %p46 = scmp.eq.s32.totalorder %s16, 1
      %p47 = por %p45, %p46
      %p48 = scmp.ne.s32.totalorder %s40, %s43
      %p49 = scmp.eq.s32.totalorder %s16, 0
      %p50 = por %p48, %p49
      %p51 = scmp.ne.s32.totalorder %s40, %s43
      %p52 = scmp.eq.s32.totalorder %s21, 1
      %p53 = por %p51, %p52
      %p54 = scmp.ne.s32.totalorder %s43, %s44
      %p55 = scmp.eq.s32.totalorder %s21, 0
      %p56 = por %p54, %p55
      %p57 = scmp.ne.s32.totalorder %s43, %s44
      %p58 = scmp.eq.s32.totalorder %s22, 1
      %p59 = por %p57, %p58
      %p61 = scmp.ne.s32.totalorder %s44, %s60
      %p62 = scmp.eq.s32.totalorder %s22, 0
      %p63 = por %p61, %p62
      %s65 = sadd.s32 %s64, 1
      %p68 = scmp.eq.s32.totalorder %s16, 1
      %p69 = scmp.ne.s32.totalorder %s64, %s66
      %p70 = scmp.eq.s32.totalorder %s16, 0
      %p71 = por %p69, %p70
      %p72 = scmp.ne.s32.totalorder %s64, %s66
      %p73 = scmp.eq.s32.totalorder %s21, 1
      %p74 = por %p72, %p73
      %p75 = scmp.ne.s32.totalorder %s66, %s67
      %p76 = scmp.eq.s32.totalorder %s21, 0
      %p77 = por %p75, %p76
      %p78 = scmp.ne.s32.totalorder %s66, %s67
      %p79 = scmp.eq.s32.totalorder %s22, 1
      %p80 = por %p78, %p79
      %p82 = scmp.ne.s32.totalorder %s67, %s81
      %p83 = scmp.eq.s32.totalorder %s22, 0
      %p84 = por %p82, %p83
      %s86 = sadd.s32 %s85, 1
      %p89 = scmp.eq.s32.totalorder %s16, 1
      %p90 = scmp.ne.s32.totalorder %s85, %s87
      %p91 = scmp.eq.s32.totalorder %s16, 0
      %p92 = por %p90, %p91
      %p93 = scmp.ne.s32.totalorder %s85, %s87
      %p94 = scmp.eq.s32.totalorder %s21, 1
      %p95 = por %p93, %p94
      %p96 = scmp.ne.s32.totalorder %s87, %s88
      %p97 = scmp.eq.s32.totalorder %s21, 0
      %p98 = por %p96, %p97
      %p99 = scmp.ne.s32.totalorder %s87, %s88
      %p100 = scmp.eq.s32.totalorder %s22, 1
      %p101 = por %p99, %p100
      %p103 = scmp.ne.s32.totalorder %s88, %s102
      %p104 = scmp.eq.s32.totalorder %s22, 0
      %p105 = por %p103, %p104
      %s107 = sadd.s32 %s106, 1
      %p110 = scmp.eq.s32.totalorder %s16, 1
      %p111 = scmp.ne.s32.totalorder %s106, %s108
      %p112 = scmp.eq.s32.totalorder %s16, 0
      %p113 = por %p111, %p112
      %p114 = scmp.ne.s32.totalorder %s106, %s108
      %p115 = scmp.eq.s32.totalorder %s21, 1
      %p116 = por %p114, %p115
      %p117 = scmp.ne.s32.totalorder %s108, %s109
      %p118 = scmp.eq.s32.totalorder %s21, 0
      %p119 = por %p117, %p118
      %p120 = scmp.ne.s32.totalorder %s108, %s109
      %p121 = scmp.eq.s32.totalorder %s22, 1
      %p122 = por %p120, %p121
      %p124 = scmp.ne.s32.totalorder %s109, %s123
      %p125 = scmp.eq.s32.totalorder %s22, 0
      %p126 = por %p124, %p125
      %s128 = sadd.s32 %s127, 1
      %p131 = scmp.eq.s32.totalorder %s16, 1
      %p132 = scmp.ne.s32.totalorder %s127, %s129
      %p133 = scmp.eq.s32.totalorder %s16, 0
      %p134 = por %p132, %p133
      %p135 = scmp.ne.s32.totalorder %s127, %s129
      %p136 = scmp.eq.s32.totalorder %s21, 1
      %p137 = por %p135, %p136
      %p138 = scmp.ne.s32.totalorder %s129, %s130
      %p139 = scmp.eq.s32.totalorder %s21, 0
      %p140 = por %p138, %p139
      %p141 = scmp.ne.s32.totalorder %s129, %s130
      %p142 = scmp.eq.s32.totalorder %s22, 1
      %p143 = por %p141, %p142
      %p145 = scmp.ne.s32.totalorder %s130, %s144
      %p146 = scmp.eq.s32.totalorder %s22, 0
      %p147 = por %p145, %p146
      %s149 = sadd.s32 %s148, 1
      %p152 = scmp.eq.s32.totalorder %s16, 1
      %p153 = scmp.ne.s32.totalorder %s148, %s150
      %p154 = scmp.eq.s32.totalorder %s16, 0
      %p155 = por %p153, %p154
      %p156 = scmp.ne.s32.totalorder %s148, %s150
      %p157 = scmp.eq.s32.totalorder %s21, 1
      %p158 = por %p156, %p157
      %p159 = scmp.ne.s32.totalorder %s150, %s151
      %p160 = scmp.eq.s32.totalorder %s21, 0
      %p161 = por %p159, %p160
      %p162 = scmp.ne.s32.totalorder %s150, %s151
      %p163 = scmp.eq.s32.totalorder %s22, 1
      %p164 = por %p162, %p163
      %p166 = scmp.ne.s32.totalorder %s151, %s165
      %p167 = scmp.eq.s32.totalorder %s22, 0
      %p168 = por %p166, %p167
      %s170 = sadd.s32 %s169, 1
      %p173 = scmp.eq.s32.totalorder %s16, 1
      %p174 = scmp.ne.s32.totalorder %s169, %s171
      %p175 = scmp.eq.s32.totalorder %s16, 0
      %p176 = por %p174, %p175
      %p177 = scmp.ne.s32.totalorder %s169, %s171
      %p178 = scmp.eq.s32.totalorder %s21, 1
      %p179 = por %p177, %p178
      %p180 = scmp.ne.s32.totalorder %s171, %s172
      %p181 = scmp.eq.s32.totalorder %s21, 0
      %p182 = por %p180, %p181
      %p183 = scmp.ne.s32.totalorder %s171, %s172
      %p184 = scmp.eq.s32.totalorder %s22, 1
      %p185 = por %p183, %p184
      %p187 = scmp.ne.s32.totalorder %s172, %s186
      %p188 = scmp.eq.s32.totalorder %s22, 0
      %p189 = por %p187, %p188
      %s190 = ssub.s32 %s23, %s35
      %s191 = ssub.s32 %s24, %s31
      %s192 = sor.u32 %s190, %s191
      %p193 = scmp.eq.s32.totalorder %s192, 0
      %s195 = sadd.s32 %s194, 1
      %s196 = scalar_select %p193, %s194, %s195
      %p199 = pneg %p193
      %p200 = scmp.eq.s32.totalorder %s16, 1
      %p201 = por %p199, %p200
      %p202 = scmp.ne.s32.totalorder %s194, %s197
      %p203 = scmp.eq.s32.totalorder %s16, 0
      %p204 = por %p202, %p203
      %p205 = scmp.ne.s32.totalorder %s194, %s197
      %p206 = scmp.eq.s32.totalorder %s21, 1
      %p207 = por %p205, %p206
      %p208 = scmp.ne.s32.totalorder %s197, %s198
      %p209 = scmp.eq.s32.totalorder %s21, 0
      %p210 = por %p208, %p209
      %p211 = scmp.ne.s32.totalorder %s197, %s198
      %p212 = scmp.eq.s32.totalorder %s22, 1
      %p213 = por %p211, %p212
      %p215 = scmp.ne.s32.totalorder %s198, %s214
      %p216 = scmp.eq.s32.totalorder %s22, 0
      %p217 = por %p215, %p216
      %p218 = scmp.le.s32.totalorder 1, %s16
      %p219 = scmp.lt.s32.totalorder %s16, 3
      %p220 = pnand %p218, %p219
      %p221 = pneg %p220
      // Predicated region
      $region9: #{tpu_custom_call.1} parent=5 // pred_check
        _
      $region10: #{tpu_custom_call.1} parent=5 // pred_check_branch
        %223 = sbr.rel (%p220) target = $region12
      $region11: #{tpu_custom_call.1} parent=5 // pred_region
        %s224 = ssub.s32 %s16, 1
        // Predicated region
        $region13: #{tpu_custom_call.1} parent=11 // pred_check
          %p225 = pneg %p77
        $region14: #{tpu_custom_call.1} parent=11 // pred_check_branch
          %227 = sbr.rel (%p225) target = $region16
        $region15: #{tpu_custom_call.1} parent=11 // pred_region
          _
        $region16: #{tpu_custom_call.1} parent=11 // pred_fallthru
          _
        // Predicated region
        $region17: #{tpu_custom_call.1} parent=11 // pred_check
          %p228 = pneg %p98
        $region18: #{tpu_custom_call.1} parent=11 // pred_check_branch
          %230 = sbr.rel (%p228) target = $region20
        $region19: #{tpu_custom_call.1} parent=11 // pred_region
          _
        $region20: #{tpu_custom_call.1} parent=11 // pred_fallthru
          _
        // Predicated region
        $region21: #{tpu_custom_call.1} parent=11 // pred_check
          %p231 = pneg %p119
        $region22: #{tpu_custom_call.1} parent=11 // pred_check_branch
          %233 = sbr.rel (%p231) target = $region24
        $region23: #{tpu_custom_call.1} parent=11 // pred_region
          _
        $region24: #{tpu_custom_call.1} parent=11 // pred_fallthru
          _
        // Predicated region
        $region25: #{tpu_custom_call.1} parent=11 // pred_check
          %p234 = pneg %p140
        $region26: #{tpu_custom_call.1} parent=11 // pred_check_branch
          %236 = sbr.rel (%p234) target = $region28
        $region27: #{tpu_custom_call.1} parent=11 // pred_region
          _
        $region28: #{tpu_custom_call.1} parent=11 // pred_fallthru
          _
        // Predicated region
        $region29: #{tpu_custom_call.1} parent=11 // pred_check
          %p237 = pneg %p161
        $region30: #{tpu_custom_call.1} parent=11 // pred_check_branch
          %239 = sbr.rel (%p237) target = $region32
        $region31: #{tpu_custom_call.1} parent=11 // pred_region
          _
        $region32: #{tpu_custom_call.1} parent=11 // pred_fallthru
          _
        // Predicated region
        $region33: #{tpu_custom_call.1} parent=11 // pred_check
          %p240 = pneg %p182
        $region34: #{tpu_custom_call.1} parent=11 // pred_check_branch
          %242 = sbr.rel (%p240) target = $region36
        $region35: #{tpu_custom_call.1} parent=11 // pred_region
          _
        $region36: #{tpu_custom_call.1} parent=11 // pred_fallthru
          _
      $region12: #{tpu_custom_call.1} parent=5 // pred_fallthru
        _
      %p243 = scmp.lt.s32.totalorder %s16, 2
      // Predicated region
      $region37: #{tpu_custom_call.1} parent=5 // pred_check
        %p244 = pneg %p243
      $region38: #{tpu_custom_call.1} parent=5 // pred_check_branch
        %246 = sbr.rel (%p244) target = $region40
      $region39: #{tpu_custom_call.1} parent=5 // pred_region
        // Predicated region
        $region41: #{tpu_custom_call.1} parent=39 // pred_check
          %p247 = pneg %p50
        $region42: #{tpu_custom_call.1} parent=39 // pred_check_branch
          %249 = sbr.rel (%p247) target = $region44
        $region43: #{tpu_custom_call.1} parent=39 // pred_region
          %p250 = scmp.lt.s32.totalorder %s23, 1
          %s251 = scalar_select %p250, %s23, 1
          %p252 = scmp.lt.s32.totalorder %s24, 0
          %s253 = scalar_select %p252, %s24, 0
          %s254 = sadd.s32 %s253, %s251
          %s255 = smul.addr %s254, 4
          %s256 = scalar_lea.vmem %s0, %s255
        $region44: #{tpu_custom_call.1} parent=39 // pred_fallthru
          _
      $region40: #{tpu_custom_call.1} parent=5 // pred_fallthru
        _
      %p257 = scmp.le.s32.totalorder 1, %s16
      %p258 = scmp.lt.s32.totalorder %s16, 3
      %p259 = pnand %p257, %p258
      %p260 = pneg %p259
      // Predicated region
      $region45: #{tpu_custom_call.1} parent=5 // pred_check
        _
      $region46: #{tpu_custom_call.1} parent=5 // pred_check_branch
        %262 = sbr.rel (%p259) target = $region48
      $region47: #{tpu_custom_call.1} parent=5 // pred_region
        %s263 = ssub.s32 %s16, 1
        %p264 = scmp.lt.s32.totalorder %s25, 1
        %s265 = scalar_select %p264, %s25, 1
        %p266 = scmp.lt.s32.totalorder %s26, 0
        %s267 = scalar_select %p266, %s26, 0
        %s268 = sadd.s32 %s267, %s265
        %s269 = smul.addr %s268, 4
        %s270 = scalar_lea.vmem %s0, %s269
        %p271 = pneg %p56
        %p272 = pneg %p53
        %p273 = pneg %p77
        %p274 = pneg %p74
        %p275 = pneg %p98
        %p276 = pneg %p95
        %p277 = pneg %p119
        %p278 = pneg %p116
        %p279 = pneg %p140
        %p280 = pneg %p137
        %p281 = pneg %p161
        %p282 = pneg %p158
        %p283 = pneg %p182
        %p284 = pneg %p179
        %p285 = pneg %p210
        %p286 = pneg %p207
        %s287 = sand.u32 %s197, 1
        %s288 = scalar_lea.sflag [#allocation3], %s287
        %s289 = sand.u32 %s197, 1
        %s290 = smul.addr %s289, 16
        %s291 = scalar_lea.vmem [#allocation2], %s290
        %p292 = scmp.lt.s32.totalorder %s25, 1
        %s293 = scalar_select %p292, %s25, 1
        %p294 = scmp.lt.s32.totalorder %s26, 0
        %s295 = scalar_select %p294, %s26, 0
        %s296 = sadd.s32 %s295, %s293
        %s297 = smul.addr %s296, 4
        %s298 = scalar_lea.vmem %s0, %s297
        %v300 = vld [vmem:[%s298] sm:$0xf]
        %v301 = vld [vmem:[%s1] sm:$0xf]
        %v302 = vld [vmem:[%s1 + $0x4] sm:$0xf]
        %v303 = vld [vmem:[%s1 + $0x8] sm:$0xf]
        %v304 = vld [vmem:[%s1 + $0xc] sm:$0xf]
        %v305 = vld [vmem:[%s2] sm:$0xff]
        %v306 = vld [vmem:[%s2 + $0x8] sm:$0xff]
        %v307 = vld [vmem:[%s2 + $0x10] sm:$0xff]
        %v308 = vld [vmem:[%s2 + $0x18] sm:$0xff]
        %v309 = vpack.c.bf16 %v300, %v300
        %311 = vset.pattern.permute.xlu0 0
        %312 = vperm.xlu0 %311, %v305
        %v313 = vpop.permute.xlu0 %312
        %316 = vset.pattern.permute.xlu0 0
        %317 = vperm.xlu0 %316, %v306
        %v318 = vpop.permute.xlu0 %317
        %321 = vset.pattern.permute.xlu0 0
        %322 = vperm.xlu0 %321, %v307
        %v323 = vpop.permute.xlu0 %322
        %326 = vset.pattern.permute.xlu0 0
        %327 = vperm.xlu0 %326, %v308
        %v328 = vpop.permute.xlu0 %327
        %v334 = vunpack.c.l.b16 %v301
        %v335 = vunpack.c.l.b16 %v302
        %v336 = vunpack.c.l.b16 %v303
        %v337 = vunpack.c.l.b16 %v304
        %v338 = vpack.c.b16 %v335, %v334
        %v339 = vpack.c.b16 %v337, %v336
        %vm340 = vcmask 31744
        %v342 = vsel %vm340, %v338, 0
        %v345 = vsel %vm340, %v339, 0
        %vm347 = vcmask 1041408
        %v349 = vsel %vm347, %v309, 0
        %351 = vmatpush.bf16.msra.mxu0 0
        %352 = vmatpush.bf16.msra.mxu0 0
        %353 = vmatpush.bf16.msra.mxu0 0
        %354 = vmatpush.bf16.msra.mxu0 0
        %355 = vmatpush.bf16.msra.mxu0 0
        %356 = vmatpush.bf16.msra.mxu0 0
        %357 = vmatpush.bf16.msra.mxu0 0
        %358 = vmatpush.bf16.msra.mxu0 %v349
        %359 = vmatmul.bf16.gmra.mxu0 %v342
        %v360 = vpop.f32.mrf.mxu0
        %v361 = vadd.f32 %v313, %v360
        %v362 = vpop.f32.mrf.mxu0
        %v363 = vadd.f32 %v318, %v362
        %364 = vmatmul.bf16.gmra.mxu0 %v345
        %v365 = vpop.f32.mrf.mxu0
        %v366 = vadd.f32 %v323, %v365
        %v367 = vpop.f32.mrf.mxu0
        %v368 = vadd.f32 %v328, %v367
        %369 = vdwg.mxu0
        %v370 = vmax.f32 %v361, 0.0
        %v371 = vmax.f32 %v363, 0.0
        %v372 = vmax.f32 %v366, 0.0
        %v373 = vmax.f32 %v368, 0.0
        %v374 = vld [vmem:[%s3] sm:$0xf]
        %v375 = vld [vmem:[%s3 + $0x4] sm:$0xf]
        %v376 = vld [vmem:[%s3 + $0x8] sm:$0xf]
        %v377 = vld [vmem:[%s3 + $0xc] sm:$0xf]
        %v378 = vld [vmem:[%s3 + $0x10] sm:$0xf]
        %v379 = vld [vmem:[%s3 + $0x14] sm:$0xf]
        %v380 = vld [vmem:[%s3 + $0x18] sm:$0xf]
        %v381 = vld [vmem:[%s3 + $0x1c] sm:$0xf]
        %v382 = vld [vmem:[%s4] sm:$0xff]
        %v383 = vld [vmem:[%s4 + $0x8] sm:$0xff]
        %v384 = vld [vmem:[%s4 + $0x10] sm:$0xff]
        %v385 = vld [vmem:[%s4 + $0x18] sm:$0xff]
        %v386 = vld [vmem:[%s4 + $0x20] sm:$0xff]
        %v387 = vld [vmem:[%s4 + $0x28] sm:$0xff]
        %v388 = vld [vmem:[%s4 + $0x30] sm:$0xff]
        %v389 = vld [vmem:[%s4 + $0x38] sm:$0xff]
        %v390 = vpack.c.bf16 %v371, %v370
        %v391 = vpack.c.bf16 %v373, %v372
        %393 = vset.pattern.permute.xlu0 0
        %394 = vperm.xlu0 %393, %v382
        %v395 = vpop.permute.xlu0 %394
        %398 = vset.pattern.permute.xlu0 0
        %399 = vperm.xlu0 %398, %v383
        %v400 = vpop.permute.xlu0 %399
        %403 = vset.pattern.permute.xlu0 0
        %404 = vperm.xlu0 %403, %v384
        %v405 = vpop.permute.xlu0 %404
        %408 = vset.pattern.permute.xlu0 0
        %409 = vperm.xlu0 %408, %v385
        %v410 = vpop.permute.xlu0 %409
        %413 = vset.pattern.permute.xlu0 0
        %414 = vperm.xlu0 %413, %v386
        %v415 = vpop.permute.xlu0 %414
        %418 = vset.pattern.permute.xlu0 0
        %419 = vperm.xlu0 %418, %v387
        %v420 = vpop.permute.xlu0 %419
        %423 = vset.pattern.permute.xlu0 0
        %424 = vperm.xlu0 %423, %v388
        %v425 = vpop.permute.xlu0 %424
        %428 = vset.pattern.permute.xlu0 0
        %429 = vperm.xlu0 %428, %v389
        %v430 = vpop.permute.xlu0 %429
        %v440 = vunpack.c.l.b16 %v374
        %v441 = vunpack.c.l.b16 %v375
        %v442 = vunpack.c.l.b16 %v376
        %v443 = vunpack.c.l.b16 %v377
        %v444 = vunpack.c.l.b16 %v378
        %v445 = vunpack.c.l.b16 %v379
        %v446 = vunpack.c.l.b16 %v380
        %v447 = vunpack.c.l.b16 %v381
        %v448 = vpack.c.b16 %v441, %v440
        %v449 = vpack.c.b16 %v443, %v442
        %v450 = vpack.c.b16 %v445, %v444
        %v451 = vpack.c.b16 %v447, %v446
        %vm452 = vcmask 261120
        %v454 = vsel %vm452, %v448, 0
        %v457 = vsel %vm452, %v449, 0
        %v460 = vsel %vm452, %v450, 0
        %v463 = vsel %vm452, %v451, 0
        %465 = vmatpush.bf16.msra.mxu0 0
        %466 = vmatpush.bf16.msra.mxu0 0
        %467 = vmatpush.bf16.msra.mxu0 0
        %468 = vmatpush.bf16.msra.mxu0 0
        %469 = vmatpush.bf16.msra.mxu0 0
        %470 = vmatpush.bf16.msra.mxu0 0
        %471 = vmatpush.bf16.msra.mxu0 %v391
        %472 = vmatpush.bf16.msra.mxu0 %v390
        %473 = vmatmul.bf16.gmra.mxu0 %v454
        %v474 = vpop.f32.mrf.mxu0
        %v475 = vadd.f32 %v395, %v474
        %v476 = vpop.f32.mrf.mxu0
        %v477 = vadd.f32 %v400, %v476
        %478 = vmatmul.bf16.gmra.mxu0 %v457
        %v479 = vpop.f32.mrf.mxu0
        %v480 = vadd.f32 %v405, %v479
        %v481 = vpop.f32.mrf.mxu0
        %v482 = vadd.f32 %v410, %v481
        %483 = vmatmul.bf16.gmra.mxu0 %v460
        %v484 = vpop.f32.mrf.mxu0
        %v485 = vadd.f32 %v415, %v484
        %v486 = vpop.f32.mrf.mxu0
        %v487 = vadd.f32 %v420, %v486
        %488 = vmatmul.bf16.gmra.mxu0 %v463
        %v489 = vpop.f32.mrf.mxu0
        %v490 = vadd.f32 %v425, %v489
        %v491 = vpop.f32.mrf.mxu0
        %v492 = vadd.f32 %v430, %v491
        %493 = vdwg.mxu0
        %v494 = vmax.f32 %v475, 0.0
        %v495 = vmax.f32 %v477, 0.0
        %v496 = vmax.f32 %v480, 0.0
        %v497 = vmax.f32 %v482, 0.0
        %v498 = vmax.f32 %v485, 0.0
        %v499 = vmax.f32 %v487, 0.0
        %v500 = vmax.f32 %v490, 0.0
        %v501 = vmax.f32 %v492, 0.0
        %v502 = vld [vmem:[%s5] sm:$0xf]
        %v503 = vld [vmem:[%s5 + $0x4] sm:$0xf]
        %v504 = vld [vmem:[%s6] sm:$0xff]
        %v505 = vld [vmem:[%s6 + $0x8] sm:$0xff]
        %v506 = vpack.c.bf16 %v495, %v494
        %v507 = vpack.c.bf16 %v497, %v496
        %v508 = vpack.c.bf16 %v499, %v498
        %v509 = vpack.c.bf16 %v501, %v500
        %511 = vset.pattern.permute.xlu0 0
        %512 = vperm.xlu0 %511, %v504
        %v513 = vpop.permute.xlu0 %512
        %516 = vset.pattern.permute.xlu0 0
        %517 = vperm.xlu0 %516, %v505
        %v518 = vpop.permute.xlu0 %517
        %v522 = vunpack.c.l.b16 %v502
        %v523 = vunpack.c.l.b16 %v503
        %v524 = vpack.c.b16 %v523, %v522
        %vm525 = vcmask 523264
        %v527 = vsel %vm525, %v524, 0
        %529 = vmatpush.bf16.msra.mxu0 0
        %530 = vmatpush.bf16.msra.mxu0 0
        %531 = vmatpush.bf16.msra.mxu0 0
        %532 = vmatpush.bf16.msra.mxu0 0
        %533 = vmatpush.bf16.msra.mxu0 %v509
        %534 = vmatpush.bf16.msra.mxu0 %v508
        %535 = vmatpush.bf16.msra.mxu0 %v507
        %536 = vmatpush.bf16.msra.mxu0 %v506
        %537 = vmatmul.bf16.gmra.mxu0 %v527
        %v538 = vpop.f32.mrf.mxu0
        %v539 = vadd.f32 %v513, %v538
        %v540 = vpop.f32.mrf.mxu0
        %v541 = vadd.f32 %v518, %v540
        %542 = vdwg.mxu0
        %543 = vst [vmem:[%s291] sm:$0xff] %v539
        %544 = vst [vmem:[%s291 + $0x8] sm:$0xff] %v541
        %s545 = sand.u32 %s197, 1
        %s546 = scalar_lea.sflag [#allocation3], %s545
        %s547 = sand.u32 %s197, 1
        %s548 = smul.addr %s547, 16
        %s549 = scalar_lea.vmem [#allocation2], %s548
        // Predicated region
        $region49: #{tpu_custom_call.1} parent=47 // pred_check
          %p550 = pneg %p207
        $region50: #{tpu_custom_call.1} parent=47 // pred_check_branch
          %552 = sbr.rel (%p550) target = $region52
        $region51: #{tpu_custom_call.1} parent=47 // pred_region
          %554 = vsyncadd %s546, 0
          %s555 = smul.addr %s25, 2
          %s556 = sadd.s32 %s26, %s555
          %s557 = smul.addr %s556, 8
          %s558 = scalar_lea.hbm %s7, %s557
          %s559 = sshll.u32 %s549, 4
          %s560 = int_to_ptr.vmem [resolvable:$true] %s559
          %s561 = sshll.u32 %s558, 4
          %s562 = int_to_ptr.hbm [resolvable:$true] %s561
          %567 = dma.vmem_to_hbm [thread:$0]  %s560, 256, %s562, %s546, 128, 128, 8
        $region52: #{tpu_custom_call.1} parent=47 // pred_fallthru
          _
      $region48: #{tpu_custom_call.1} parent=5 // pred_fallthru
        _
      %p568 = scmp.le.s32.totalorder 2, %s16
      // Predicated region
      $region53: #{tpu_custom_call.1} parent=5 // pred_check
        %p569 = pneg %p568
      $region54: #{tpu_custom_call.1} parent=5 // pred_check_branch
        %571 = sbr.rel (%p569) target = $region56
      $region55: #{tpu_custom_call.1} parent=5 // pred_region
        %s572 = ssub.s32 %s16, 2
        // Predicated region
        $region57: #{tpu_custom_call.1} parent=55 // pred_check
          %p573 = pneg %p213
        $region58: #{tpu_custom_call.1} parent=55 // pred_check_branch
          %575 = sbr.rel (%p573) target = $region60
        $region59: #{tpu_custom_call.1} parent=55 // pred_region
          %s576 = sand.u32 %s198, 1
          %s577 = scalar_lea.sflag [#allocation3], %s576
          %s578 = sand.u32 %s198, 1
          %s579 = smul.addr %s578, 16
          %s580 = scalar_lea.vmem [#allocation2], %s579
          %582 = dma.done %s577, 256
        $region60: #{tpu_custom_call.1} parent=55 // pred_fallthru
          _
      $region56: #{tpu_custom_call.1} parent=5 // pred_fallthru
        _
    $region6: #{tpu_custom_call.1} parent=1 // loop_footer
      %s20 = sadd.s32 1, %s16
    $region7: #{tpu_custom_call.1} parent=1 // loop_footer_branch
      %15 = sbr.rel target = $region3
    $region8: #{tpu_custom_call.1} parent=1 // loop_exit
      _
    %583 = vsyncpa [#allocation3], 1
    %s584 = scalar_lea.sflag [#allocation3], 1
    %585 = vsyncpa %s584, 1

</llo_original>
